<compile_context>
chip_gen: v7x
topology: tpu7x:2x2x1
jax: 0.10.0
libtpu: 0.0.40
codegen_flags: <defaults>
</compile_context>

<pallas_src>
import jax
import jax.numpy as jnp
from jax.experimental import pallas as pl
from jax.experimental.pallas import tpu as pltpu


def _time_varying_f_kernel(x_ref, a_ref, b_ref, c_ref, o_ref):
    # x_ref:            (1, 1) scalar parameter in SMEM (resident across grid)
    # a_ref/b_ref/c_ref: (TILE_T, D) coefficient tiles in VMEM
    # o_ref:            (TILE_T, D) output tile in VMEM
    x = x_ref[0, 0]
    # Horner form: (a*x + b)*x + c  -> 2 vmul + 2 vadd per vreg on the VPU.
    o_ref[...] = (a_ref[...] * x + b_ref[...]) * x + c_ref[...]


def _pick_tile_t(T, max_tile_t):
    """Largest multiple of 8 that divides T and is <= max_tile_t.

    Falls back to the full extent T (always a legal block size) if no such
    divisor exists (e.g. T not a multiple of 8).
    """
    tile = min(T, max_tile_t)
    tile -= tile % 8
    while tile >= 8:
        if T % tile == 0:
            return tile
        tile -= 8
    return T


def simple_time_varying_forward(x_param, a, b, c, *, max_tile_t=512):
    """Pallas equivalent of model.forward(f) with f_t(x) = a_t*x^2 + b_t*x + c_t.

    a, b, c: (T, D) time-varying coefficients (D=128-multiple keeps stores
             lane-dense; the full-extent D block is legal for any D).
    x_param: scalar model parameter (the module's single nn.Parameter).
    """
    T, D = a.shape
    assert b.shape == (T, D) and c.shape == (T, D)

    tile_t = _pick_tile_t(T, max_tile_t)
    num_tiles = T // tile_t

    a = a.astype(jnp.float32)
    b = b.astype(jnp.float32)
    c = c.astype(jnp.float32)
    x_smem = jnp.reshape(jnp.asarray(x_param, dtype=jnp.float32), (1, 1))

    coef_spec = pl.BlockSpec((tile_t, D), lambda i: (i, 0))

    grid_spec = pltpu.PrefetchScalarGridSpec(
        num_scalar_prefetch=0,
        grid=(num_tiles,),
        in_specs=[
            # Scalar parameter: untiled, resident in SMEM for the whole call.
            pl.BlockSpec(memory_space=pltpu.MemorySpace.SMEM),
            coef_spec,  # a
            coef_spec,  # b
            coef_spec,  # c
        ],
        out_specs=pl.BlockSpec((tile_t, D), lambda i: (i, 0)),
    )

    return pl.pallas_call(
        _time_varying_f_kernel,
        out_shape=jax.ShapeDtypeStruct((T, D), jnp.float32),
        grid_spec=grid_spec,
        compiler_params=pltpu.CompilerParams(
            # Independent timestep tiles: megacore-shardable on v7x,
            # harmless on single-TC v5e/v6e.
            dimension_semantics=("parallel",),
        ),
    )(x_smem, a, b, c)


if __name__ == "__main__":
    key = jax.random.PRNGKey(0)
    k_x, k_a, k_b, k_c = jax.random.split(key, 4)

    # Deterministic parameter init: Uniform(0, 5) sample, matching the module's
    # torch.distributions.Uniform(0, 5).sample() default.
    x_param = jax.random.uniform(k_x, (), minval=0.0, maxval=5.0, dtype=jnp.float32)

    # Small time-varying inputs (T time steps, D features). max_tile_t=8
    # forces a 4-step grid so the tiled/pipelined path is exercised even at
    # this small demo shape.
    T, D = 32, 128
    a = jax.random.normal(k_a, (T, D), dtype=jnp.float32)
    b = jax.random.normal(k_b, (T, D), dtype=jnp.float32)
    c = jax.random.normal(k_c, (T, D), dtype=jnp.float32)

    out = simple_time_varying_forward(x_param, a, b, c, max_tile_t=8)
    out = jax.block_until_ready(out)

    # Reference check (pure JAX) against the same f(x).
    ref = (a * x_param + b) * x_param + c
    assert out.shape == (T, D)
    assert jnp.allclose(out, ref, atol=1e-5, rtol=1e-5)

    # TODO(synk): arbitrary Python lambdas `f` cannot be passed into a kernel;
    # a concrete time-varying quadratic is baked in as the representative f.
    print("KERNEL_OK")
</pallas_src>

<mosaic_0001>
module attributes {stable_mosaic.version = 11 : i64} {
  func.func @_time_varying_f_kernel(%arg0: i32, %arg1: memref<1x1xf32, #tpu.memory_space<smem>>, %arg2: memref<8x128xf32, #tpu.memory_space<vmem>>, %arg3: memref<8x128xf32, #tpu.memory_space<vmem>>, %arg4: memref<8x128xf32, #tpu.memory_space<vmem>>, %arg5: memref<8x128xf32, #tpu.memory_space<vmem>>) attributes {dimension_semantics = [#tpu.dimension_semantics<parallel>], iteration_bounds = array<i64: 4>, scalar_prefetch = 0 : i64, scratch_operands = 0 : i64, tpu.core_type = #tpu.core_type<tc>, window_params = [{transform_indices = @transform_0, window_bounds = array<i64: 1, 1>}, {transform_indices = @transform_1, window_bounds = array<i64: 8, 128>}, {transform_indices = @transform_2, window_bounds = array<i64: 8, 128>}, {transform_indices = @transform_3, window_bounds = array<i64: 8, 128>}, {transform_indices = @transform_4, window_bounds = array<i64: 8, 128>}]} {
    %c0 = arith.constant 0 : index
    %c0_0 = arith.constant 0 : index
    %0 = memref.load %arg1[%c0, %c0_0] : memref<1x1xf32, #tpu.memory_space<smem>>
    %c0_1 = arith.constant 0 : index
    %c0_2 = arith.constant 0 : index
    %1 = vector.load %arg2[%c0_1, %c0_2] : memref<8x128xf32, #tpu.memory_space<vmem>>, vector<8x128xf32>
    %2 = vector.broadcast %0 : f32 to vector<8x128xf32>
    %3 = arith.mulf %1, %2 : vector<8x128xf32>
    %c0_3 = arith.constant 0 : index
    %c0_4 = arith.constant 0 : index
    %4 = vector.load %arg3[%c0_3, %c0_4] : memref<8x128xf32, #tpu.memory_space<vmem>>, vector<8x128xf32>
    %5 = arith.addf %3, %4 : vector<8x128xf32>
    %6 = vector.broadcast %0 : f32 to vector<8x128xf32>
    %7 = arith.mulf %5, %6 : vector<8x128xf32>
    %c0_5 = arith.constant 0 : index
    %c0_6 = arith.constant 0 : index
    %8 = vector.load %arg4[%c0_5, %c0_6] : memref<8x128xf32, #tpu.memory_space<vmem>>, vector<8x128xf32>
    %9 = arith.addf %7, %8 : vector<8x128xf32>
    %c0_7 = arith.constant 0 : index
    %c0_8 = arith.constant 0 : index
    %10 = vector.load %arg5[%c0_7, %c0_8] : memref<8x128xf32, #tpu.memory_space<vmem>>, vector<8x128xf32>
    tpu.vector_store %arg5[%c0_7, %c0_8], %9 {strides = array<i32>} : memref<8x128xf32, #tpu.memory_space<vmem>>, vector<8x128xf32>,
    return
  }
  func.func @transform_0(%arg0: i32) -> (i32, i32) {
    %c0_i32 = arith.constant 0 : i32
    %c0_i32_0 = arith.constant 0 : i32
    %c0_i32_1 = arith.constant 0 : i32
    return %c0_i32, %c0_i32_0 : i32, i32
  }
  func.func @transform_1(%arg0: i32) -> (i32, i32) {
    %c0_i32 = arith.constant 0 : i32
    %c0_i32_0 = arith.constant 0 : i32
    return %arg0, %c0_i32 : i32, i32
  }
  func.func @transform_2(%arg0: i32) -> (i32, i32) {
    %c0_i32 = arith.constant 0 : i32
    %c0_i32_0 = arith.constant 0 : i32
    return %arg0, %c0_i32 : i32, i32
  }
  func.func @transform_3(%arg0: i32) -> (i32, i32) {
    %c0_i32 = arith.constant 0 : i32
    %c0_i32_0 = arith.constant 0 : i32
    return %arg0, %c0_i32 : i32, i32
  }
  func.func @transform_4(%arg0: i32) -> (i32, i32) {
    %c0_i32 = arith.constant 0 : i32
    %c0_i32_0 = arith.constant 0 : i32
    return %arg0, %c0_i32 : i32, i32
  }
}

</mosaic_0001>

<llo_original>
// kernel: tpu_custom_call.1
$region0: #{tpu_custom_call.1}
  #allocation0 [shape = 'u32[]', space=smem, size = 0x4, offset = 0x4, fixed_abs, tag = 'smem constant byte address 0x4 - core index']
  #allocation1 [shape = 'u32[144,128]{1,0:T(1,128)}', space=vmem, size = 0x12000, scoped, tag = 'internal scratch']
  #allocation2 [shape = 'f32[1,1]{1,0:T(1,128)S(6)}', space=smem, size = 0x200, scoped, tag = 'scoped memory for tpu_custom_call.1']
  %s0 = inlined_call_operand.<no memory space> [shape: f32[1,1], index: 0, kind: input, shape index: {}]
  %s1 = inlined_call_operand.hbm [shape: f32[32,128], index: 1, kind: input, shape index: {}]
  %s2 = inlined_call_operand.hbm [shape: f32[32,128], index: 2, kind: input, shape index: {}]
  %s3 = inlined_call_operand.hbm [shape: f32[32,128], index: 3, kind: input, shape index: {}]
  %s4 = inlined_call_operand.hbm [shape: f32[32,128], index: 4, kind: output, shape index: {}]
  %s5 = sld [smem:[#allocation0]]
  $region61: #{tpu_custom_call.1} parent=0
    _
  %s7 = ssub.s32 1, %s5
  %s8 = scalar_select 0, %s7, %s5
  %9 = sst [smem:[#allocation2]] %s0
  $region1: #{tpu_custom_call.1} parent=0
    #allocation3 [shape = 'u8[8192]{0}', space=vmem, size = 0x2000, scoped, tag = 'input window, operand 1']
    #allocation4 [shape = 's32[2]{0}', space=sflag, size = 0x8, scoped, tag = 'scoped memory for tpu_custom_call.1']
    #allocation5 [shape = 's32[2]{0}', space=sflag, size = 0x8, scoped, tag = 'scoped memory for tpu_custom_call.1']
    #allocation6 [shape = 'u8[8192]{0}', space=vmem, size = 0x2000, scoped, tag = 'input window, operand 2']
    #allocation7 [shape = 's32[2]{0}', space=sflag, size = 0x8, scoped, tag = 'scoped memory for tpu_custom_call.1']
    #allocation8 [shape = 'u8[8192]{0}', space=vmem, size = 0x2000, scoped, tag = 'input window, operand 3']
    #allocation9 [shape = 'u8[8192]{0}', space=vmem, size = 0x2000, scoped, tag = 'output window, operand 0']
    %10 = vsyncpa [#allocation4], 0
    %s11 = scalar_lea.sflag [#allocation4], 1
    %12 = vsyncpa %s11, 0
    %13 = vsyncpa [#allocation7], 0
    %s14 = scalar_lea.sflag [#allocation7], 1
    %15 = vsyncpa %s14, 0
    %16 = vsyncpa [#allocation5], 0
    %s17 = scalar_lea.sflag [#allocation5], 1
    %18 = vsyncpa %s17, 0
    loop: start=0, step=1, limit=6
    $region2: #{tpu_custom_call.1} parent=1 // loop_pre_header
      _
    $region3: #{tpu_custom_call.1} parent=1 // loop_header
      %s20 = sphi 0, %s24
      %p21 = scmp.ge.s32.totalorder %s20, 6
      %s28 = sphi 0, %s28
      %s30 = sphi 0, %s28
      %s31 = sphi 0, %s30
      %s45 = sphi 0, %s31
      %s51 = sphi 0, %s53
      %s54 = sphi 0, %s51
      %s55 = sphi 0, %s54
      %s71 = sphi 0, %s55
      %s77 = sphi 0, %s79
      %s80 = sphi 0, %s77
      %s81 = sphi 0, %s80
      %s97 = sphi 0, %s81
      %s103 = sphi 0, %s105
      %s106 = sphi 0, %s103
      %s107 = sphi 0, %s106
      %s123 = sphi 0, %s107
      %s129 = sphi 0, %s131
      %s132 = sphi 0, %s129
      %s133 = sphi 0, %s132
      %s149 = sphi 0, %s133
    $region4: #{tpu_custom_call.1} parent=1 // loop_header_branch
      %23 = sbr.rel (%p21) target = $region8
    $region5: #{tpu_custom_call.1} parent=1 // loop_body
      %s25 = ssub.s32 %s20, 1
      %s26 = ssub.s32 %s20, 2
      %s27 = sadd.s32 %s20, 1
      %s29 = sadd.s32 %s28, 1
      %p32 = scmp.eq.s32.totalorder %s20, 3
      %p33 = scmp.ne.s32.totalorder %s28, %s30
      %p34 = scmp.eq.s32.totalorder %s20, 0
      %p35 = por %p33, %p34
      %p36 = scmp.ne.s32.totalorder %s28, %s30
      %p37 = scmp.eq.s32.totalorder %s25, 3
      %p38 = por %p36, %p37
      %p39 = scmp.ne.s32.totalorder %s30, %s31
      %p40 = scmp.eq.s32.totalorder %s25, 0
      %p41 = por %p39, %p40
      %p42 = scmp.ne.s32.totalorder %s30, %s31
      %p43 = scmp.eq.s32.totalorder %s26, 3
      %p44 = por %p42, %p43
      %p46 = scmp.ne.s32.totalorder %s31, %s45
      %p47 = scmp.eq.s32.totalorder %s26, 0
      %p48 = por %p46, %p47
      %s49 = ssub.s32 %s20, %s27
      %p50 = scmp.eq.s32.totalorder %s49, 0
      %s52 = sadd.s32 %s51, 1
      %s53 = scalar_select %p50, %s51, %s52
      %p56 = pneg %p50
      %p57 = scmp.eq.s32.totalorder %s20, 3
      %p58 = por %p56, %p57
      %p59 = scmp.ne.s32.totalorder %s51, %s54
      %p60 = scmp.eq.s32.totalorder %s20, 0
      %p61 = por %p59, %p60
      %p62 = scmp.ne.s32.totalorder %s51, %s54
      %p63 = scmp.eq.s32.totalorder %s25, 3
      %p64 = por %p62, %p63
      %p65 = scmp.ne.s32.totalorder %s54, %s55
      %p66 = scmp.eq.s32.totalorder %s25, 0
      %p67 = por %p65, %p66
      %p68 = scmp.ne.s32.totalorder %s54, %s55
      %p69 = scmp.eq.s32.totalorder %s26, 3
      %p70 = por %p68, %p69
      %p72 = scmp.ne.s32.totalorder %s55, %s71
      %p73 = scmp.eq.s32.totalorder %s26, 0
      %p74 = por %p72, %p73
      %s75 = ssub.s32 %s20, %s27
      %p76 = scmp.eq.s32.totalorder %s75, 0
      %s78 = sadd.s32 %s77, 1
      %s79 = scalar_select %p76, %s77, %s78
      %p82 = pneg %p76
      %p83 = scmp.eq.s32.totalorder %s20, 3
      %p84 = por %p82, %p83
      %p85 = scmp.ne.s32.totalorder %s77, %s80
      %p86 = scmp.eq.s32.totalorder %s20, 0
      %p87 = por %p85, %p86
      %p88 = scmp.ne.s32.totalorder %s77, %s80
      %p89 = scmp.eq.s32.totalorder %s25, 3
      %p90 = por %p88, %p89
      %p91 = scmp.ne.s32.totalorder %s80, %s81
      %p92 = scmp.eq.s32.totalorder %s25, 0
      %p93 = por %p91, %p92
      %p94 = scmp.ne.s32.totalorder %s80, %s81
      %p95 = scmp.eq.s32.totalorder %s26, 3
      %p96 = por %p94, %p95
      %p98 = scmp.ne.s32.totalorder %s81, %s97
      %p99 = scmp.eq.s32.totalorder %s26, 0
      %p100 = por %p98, %p99
      %s101 = ssub.s32 %s20, %s27
      %p102 = scmp.eq.s32.totalorder %s101, 0
      %s104 = sadd.s32 %s103, 1
      %s105 = scalar_select %p102, %s103, %s104
      %p108 = pneg %p102
      %p109 = scmp.eq.s32.totalorder %s20, 3
      %p110 = por %p108, %p109
      %p111 = scmp.ne.s32.totalorder %s103, %s106
      %p112 = scmp.eq.s32.totalorder %s20, 0
      %p113 = por %p111, %p112
      %p114 = scmp.ne.s32.totalorder %s103, %s106
      %p115 = scmp.eq.s32.totalorder %s25, 3
      %p116 = por %p114, %p115
      %p117 = scmp.ne.s32.totalorder %s106, %s107
      %p118 = scmp.eq.s32.totalorder %s25, 0
      %p119 = por %p117, %p118
      %p120 = scmp.ne.s32.totalorder %s106, %s107
      %p121 = scmp.eq.s32.totalorder %s26, 3
      %p122 = por %p120, %p121
      %p124 = scmp.ne.s32.totalorder %s107, %s123
      %p125 = scmp.eq.s32.totalorder %s26, 0
      %p126 = por %p124, %p125
      %s127 = ssub.s32 %s20, %s27
      %p128 = scmp.eq.s32.totalorder %s127, 0
      %s130 = sadd.s32 %s129, 1
      %s131 = scalar_select %p128, %s129, %s130
      %p134 = pneg %p128
      %p135 = scmp.eq.s32.totalorder %s20, 3
      %p136 = por %p134, %p135
      %p137 = scmp.ne.s32.totalorder %s129, %s132
      %p138 = scmp.eq.s32.totalorder %s20, 0
      %p139 = por %p137, %p138
      %p140 = scmp.ne.s32.totalorder %s129, %s132
      %p141 = scmp.eq.s32.totalorder %s25, 3
      %p142 = por %p140, %p141
      %p143 = scmp.ne.s32.totalorder %s132, %s133
      %p144 = scmp.eq.s32.totalorder %s25, 0
      %p145 = por %p143, %p144
      %p146 = scmp.ne.s32.totalorder %s132, %s133
      %p147 = scmp.eq.s32.totalorder %s26, 3
      %p148 = por %p146, %p147
      %p150 = scmp.ne.s32.totalorder %s133, %s149
      %p151 = scmp.eq.s32.totalorder %s26, 0
      %p152 = por %p150, %p151
      %p153 = scmp.le.s32.totalorder 1, %s20
      %p154 = scmp.lt.s32.totalorder %s20, 5
      %p155 = pnand %p153, %p154
      %p156 = pneg %p155
      // Predicated region
      $region9: #{tpu_custom_call.1} parent=5 // pred_check
        _
      $region10: #{tpu_custom_call.1} parent=5 // pred_check_branch
        %158 = sbr.rel (%p155) target = $region12
      $region11: #{tpu_custom_call.1} parent=5 // pred_region
        %s159 = ssub.s32 %s20, 1
        // Predicated region
        $region13: #{tpu_custom_call.1} parent=11 // pred_check
          %p160 = pneg %p41
        $region14: #{tpu_custom_call.1} parent=11 // pred_check_branch
          %162 = sbr.rel (%p160) target = $region16
        $region15: #{tpu_custom_call.1} parent=11 // pred_region
          _
        $region16: #{tpu_custom_call.1} parent=11 // pred_fallthru
          _
      $region12: #{tpu_custom_call.1} parent=5 // pred_fallthru
        _
      %p163 = scmp.lt.s32.totalorder %s20, 4
      // Predicated region
      $region17: #{tpu_custom_call.1} parent=5 // pred_check
        %p164 = pneg %p163
      $region18: #{tpu_custom_call.1} parent=5 // pred_check_branch
        %166 = sbr.rel (%p164) target = $region20
      $region19: #{tpu_custom_call.1} parent=5 // pred_region
        // Predicated region
        $region21: #{tpu_custom_call.1} parent=19 // pred_check
          %p167 = pneg %p61
        $region22: #{tpu_custom_call.1} parent=19 // pred_check_branch
          %169 = sbr.rel (%p167) target = $region24
        $region23: #{tpu_custom_call.1} parent=19 // pred_region
          %s170 = sand.u32 %s51, 1
          %s171 = scalar_lea.sflag [#allocation4], %s170
          %s172 = sand.u32 %s51, 1
          %s173 = smul.addr %s172, 8
          %s174 = scalar_lea.vmem [#allocation3], %s173
          %s176 = ssub.s32 128, 128
          %177 = vsyncadd %s171, %s176
          %s178 = smul.addr %s20, 128
          %s179 = scalar_lea.hbm %s1, %s178
          %s181 = sshll.u32 %s174, 4
          %s182 = int_to_ptr.vmem [resolvable:$true] %s181
          %184 = dma.hbm_to_vmem [thread:$0]  %s179, 128, %s182, %s171
        $region24: #{tpu_custom_call.1} parent=19 // pred_fallthru
          _
        // Predicated region
        $region25: #{tpu_custom_call.1} parent=19 // pred_check
          %p185 = pneg %p87
        $region26: #{tpu_custom_call.1} parent=19 // pred_check_branch
          %187 = sbr.rel (%p185) target = $region28
        $region27: #{tpu_custom_call.1} parent=19 // pred_region
          %s188 = sand.u32 %s20, 1
          %s189 = scalar_lea.sflag [#allocation7], %s188
          %s190 = sand.u32 %s77, 1
          %s191 = smul.addr %s190, 8
          %s192 = scalar_lea.vmem [#allocation6], %s191
          %s194 = ssub.s32 128, 128
          %195 = vsyncadd %s189, %s194
          %s196 = smul.addr %s20, 128
          %s197 = scalar_lea.hbm %s2, %s196
          %s199 = sshll.u32 %s192, 4
          %s200 = int_to_ptr.vmem [resolvable:$true] %s199
          %202 = dma.hbm_to_vmem [thread:$0]  %s197, 128, %s200, %s189
        $region28: #{tpu_custom_call.1} parent=19 // pred_fallthru
          _
        // Predicated region
        $region29: #{tpu_custom_call.1} parent=19 // pred_check
          %p203 = pneg %p113
        $region30: #{tpu_custom_call.1} parent=19 // pred_check_branch
          %205 = sbr.rel (%p203) target = $region32
        $region31: #{tpu_custom_call.1} parent=19 // pred_region
          %s206 = sand.u32 %s20, 1
          %s207 = scalar_lea.sflag [#allocation7], %s206
          %s208 = sand.u32 %s103, 1
          %s209 = smul.addr %s208, 8
          %s210 = scalar_lea.vmem [#allocation8], %s209
          %s212 = ssub.s32 128, 128
          %213 = vsyncadd %s207, %s212
          %s214 = smul.addr %s20, 128
          %s215 = scalar_lea.hbm %s3, %s214
          %s217 = sshll.u32 %s210, 4
          %s218 = int_to_ptr.vmem [resolvable:$true] %s217
          %220 = dma.hbm_to_vmem [thread:$0]  %s215, 128, %s218, %s207
        $region32: #{tpu_custom_call.1} parent=19 // pred_fallthru
          _
      $region20: #{tpu_custom_call.1} parent=5 // pred_fallthru
        _
      %p221 = scmp.le.s32.totalorder 1, %s20
      %p222 = scmp.lt.s32.totalorder %s20, 5
      %p223 = pnand %p221, %p222
      %p224 = pneg %p223
      // Predicated region
      $region33: #{tpu_custom_call.1} parent=5 // pred_check
        _
      $region34: #{tpu_custom_call.1} parent=5 // pred_check_branch
        %226 = sbr.rel (%p223) target = $region36
      $region35: #{tpu_custom_call.1} parent=5 // pred_region
        %s227 = ssub.s32 %s20, 1
        %s228 = sand.u32 %s54, 1
        %s229 = scalar_lea.sflag [#allocation4], %s228
        %s230 = sand.u32 %s54, 1
        %s231 = smul.addr %s230, 8
        %s232 = scalar_lea.vmem [#allocation3], %s231
        // Predicated region
        $region37: #{tpu_custom_call.1} parent=35 // pred_check
          %p233 = pneg %p67
        $region38: #{tpu_custom_call.1} parent=35 // pred_check_branch
          %235 = sbr.rel (%p233) target = $region40
        $region39: #{tpu_custom_call.1} parent=35 // pred_region
          %236 = dma.done %s229, 128
        $region40: #{tpu_custom_call.1} parent=35 // pred_fallthru
          _
        %s237 = sand.u32 %s25, 1
        %s238 = scalar_lea.sflag [#allocation7], %s237
        %s239 = sand.u32 %s80, 1
        %s240 = smul.addr %s239, 8
        %s241 = scalar_lea.vmem [#allocation6], %s240
        // Predicated region
        $region41: #{tpu_custom_call.1} parent=35 // pred_check
          %p242 = pneg %p93
        $region42: #{tpu_custom_call.1} parent=35 // pred_check_branch
          %244 = sbr.rel (%p242) target = $region44
        $region43: #{tpu_custom_call.1} parent=35 // pred_region
          %245 = dma.done %s238, 128
        $region44: #{tpu_custom_call.1} parent=35 // pred_fallthru
          _
        %s246 = sand.u32 %s25, 1
        %s247 = scalar_lea.sflag [#allocation7], %s246
        %s248 = sand.u32 %s106, 1
        %s249 = smul.addr %s248, 8
        %s250 = scalar_lea.vmem [#allocation8], %s249
        // Predicated region
        $region45: #{tpu_custom_call.1} parent=35 // pred_check
          %p251 = pneg %p119
        $region46: #{tpu_custom_call.1} parent=35 // pred_check_branch
          %253 = sbr.rel (%p251) target = $region48
        $region47: #{tpu_custom_call.1} parent=35 // pred_region
          %254 = dma.done %s247, 128
        $region48: #{tpu_custom_call.1} parent=35 // pred_fallthru
          _
        %p255 = pneg %p41
        %p256 = pneg %p38
        %s257 = sand.u32 %s54, 1
        %s258 = scalar_lea.sflag [#allocation4], %s257
        %s259 = sand.u32 %s54, 1
        %s260 = smul.addr %s259, 8
        %s261 = scalar_lea.vmem [#allocation3], %s260
        %p262 = pneg %p67
        %p263 = pneg %p64
        %s264 = sand.u32 %s25, 1
        %s265 = scalar_lea.sflag [#allocation7], %s264
        %s266 = sand.u32 %s80, 1
        %s267 = smul.addr %s266, 8
        %s268 = scalar_lea.vmem [#allocation6], %s267
        %p269 = pneg %p93
        %p270 = pneg %p90
        %s271 = sand.u32 %s25, 1
        %s272 = scalar_lea.sflag [#allocation7], %s271
        %s273 = sand.u32 %s106, 1
        %s274 = smul.addr %s273, 8
        %s275 = scalar_lea.vmem [#allocation8], %s274
        %p276 = pneg %p119
        %p277 = pneg %p116
        %p278 = pneg %p145
        %p279 = pneg %p142
        %s280 = sand.u32 %s132, 1
        %s281 = scalar_lea.sflag [#allocation5], %s280
        %s282 = sand.u32 %s132, 1
        %s283 = smul.addr %s282, 8
        %s284 = scalar_lea.vmem [#allocation9], %s283
        %s285 = sld [smem:[#allocation2]]
        %v286 = vld [vmem:[%s232] sm:$0xff]
        %v287 = vstv %s285
        %v288 = vmul.f32 %v286, %v287
        %v289 = vld [vmem:[%s241] sm:$0xff]
        %v290 = vadd.f32 %v288, %v289
        %v291 = vmul.f32 %v290, %v287
        %v292 = vld [vmem:[%s250] sm:$0xff]
        %v293 = vadd.f32 %v291, %v292
        %294 = vst [vmem:[%s284] sm:$0xff] %v293
        %s295 = sand.u32 %s132, 1
        %s296 = scalar_lea.sflag [#allocation5], %s295
        %s297 = sand.u32 %s132, 1
        %s298 = smul.addr %s297, 8
        %s299 = scalar_lea.vmem [#allocation9], %s298
        // Predicated region
        $region49: #{tpu_custom_call.1} parent=35 // pred_check
          %p300 = pneg %p142
        $region50: #{tpu_custom_call.1} parent=35 // pred_check_branch
          %302 = sbr.rel (%p300) target = $region52
        $region51: #{tpu_custom_call.1} parent=35 // pred_region
          %s304 = ssub.s32 128, 128
          %305 = vsyncadd %s296, %s304
          %s306 = smul.addr %s25, 128
          %s307 = scalar_lea.hbm %s4, %s306
          %s309 = sshll.u32 %s299, 4
          %s310 = int_to_ptr.vmem [resolvable:$true] %s309
          %312 = dma.vmem_to_hbm [thread:$0]  %s310, 128, %s307, %s296
        $region52: #{tpu_custom_call.1} parent=35 // pred_fallthru
          _
      $region36: #{tpu_custom_call.1} parent=5 // pred_fallthru
        _
      %p313 = scmp.le.s32.totalorder 2, %s20
      // Predicated region
      $region53: #{tpu_custom_call.1} parent=5 // pred_check
        %p314 = pneg %p313
      $region54: #{tpu_custom_call.1} parent=5 // pred_check_branch
        %316 = sbr.rel (%p314) target = $region56
      $region55: #{tpu_custom_call.1} parent=5 // pred_region
        %s317 = ssub.s32 %s20, 2
        // Predicated region
        $region57: #{tpu_custom_call.1} parent=55 // pred_check
          %p318 = pneg %p148
        $region58: #{tpu_custom_call.1} parent=55 // pred_check_branch
          %320 = sbr.rel (%p318) target = $region60
        $region59: #{tpu_custom_call.1} parent=55 // pred_region
          %s321 = sand.u32 %s133, 1
          %s322 = scalar_lea.sflag [#allocation5], %s321
          %s323 = sand.u32 %s133, 1
          %s324 = smul.addr %s323, 8
          %s325 = scalar_lea.vmem [#allocation9], %s324
          %326 = dma.done %s322, 128
        $region60: #{tpu_custom_call.1} parent=55 // pred_fallthru
          _
      $region56: #{tpu_custom_call.1} parent=5 // pred_fallthru
        _
    $region6: #{tpu_custom_call.1} parent=1 // loop_footer
      %s24 = sadd.s32 1, %s20
    $region7: #{tpu_custom_call.1} parent=1 // loop_footer_branch
      %19 = sbr.rel target = $region3
    $region8: #{tpu_custom_call.1} parent=1 // loop_exit
      _
    %327 = vsyncpa [#allocation4], 1
    %s328 = scalar_lea.sflag [#allocation4], 1
    %329 = vsyncpa %s328, 1
    %330 = vsyncpa [#allocation7], 1
    %s331 = scalar_lea.sflag [#allocation7], 1
    %332 = vsyncpa %s331, 1
    %333 = vsyncpa [#allocation5], 1
    %s334 = scalar_lea.sflag [#allocation5], 1
    %335 = vsyncpa %s334, 1

</llo_original>
